<compile_context>
chip_gen: v5e
topology: v5e:2x2
jax: 0.10.0
libtpu: 0.0.40
codegen_flags: <defaults>
</compile_context>

<pallas_src>
import functools

import jax
import jax.numpy as jnp
from jax.experimental import pallas as pl
from jax.experimental.pallas import tpu as pltpu


def _yolo_head_kernel(x_ref, w_ref, b_ref, o_ref):
    # x_ref: (Cin, T)   w_ref: (Cout, Cin)   b_ref: (Cout, 1)   o_ref: (Cout, T)
    acc = jnp.dot(w_ref[...], x_ref[...], preferred_element_type=jnp.float32)
    o_ref[...] = (acc + b_ref[...]).astype(o_ref.dtype)


@functools.partial(jax.jit, static_argnames=("tile_hw",))
def yolo_head_forward(x_nchw, weight, bias, *, tile_hw=2048):
    """x_nchw: (N, 128, H, W) float32
       weight: (Cout, Cin, 1, 1) float32  (PyTorch Conv2d weight layout)
       bias:   (Cout,) float32
       returns: (N, H, W, Cout) float32 == detector(x).permute(0, 2, 3, 1)
    """
    n, cin, h, w = x_nchw.shape
    cout = weight.shape[0]
    hw = h * w

    # Spatial tile: multiple of 128 lanes, no larger than needed.
    t = min(tile_hw, ((hw + 127) // 128) * 128)
    grid_hw = pl.cdiv(hw, t)

    # Free reshapes only — no transpose of the 128-channel activation.
    x_flat = x_nchw.reshape(n, cin, hw)
    w_mat = weight.reshape(cout, cin)
    b_mat = bias.reshape(cout, 1)

    cost = pl.CostEstimate(
        flops=2 * n * hw * cin * cout,
        transcendentals=0,
        bytes_accessed=4 * (n * hw * cin + cout * cin + cout + n * hw * cout),
    )

    out_flat = pl.pallas_call(
        _yolo_head_kernel,
        out_shape=jax.ShapeDtypeStruct((n, cout, hw), x_nchw.dtype),
        grid=(n, grid_hw),
        in_specs=[
            pl.BlockSpec((None, cin, t), lambda b, j: (b, 0, j)),   # batch dim squeezed
            pl.BlockSpec((cout, cin), lambda b, j: (0, 0)),
            pl.BlockSpec((cout, 1), lambda b, j: (0, 0)),
        ],
        out_specs=pl.BlockSpec((None, cout, t), lambda b, j: (b, 0, j)),
        compiler_params=pltpu.CompilerParams(
            dimension_semantics=("parallel", "parallel"),
        ),
        cost_estimate=cost,
    )(x_flat, w_mat, b_mat)

    # Cheap permute on the small Cout(=24)-channel result only: NCHW -> NHWC.
    return jnp.transpose(out_flat.reshape(n, cout, h, w), (0, 2, 3, 1))


if __name__ == "__main__":
    # Module config (small): grid_size=16, num_classes=3, num_anchors=3
    grid_size = 16
    num_classes = 3
    num_anchors = 3
    cin = 128
    cout = num_anchors * (5 + num_classes)  # 24
    batch = 2

    key = jax.random.PRNGKey(0)
    kx, kw, kb = jax.random.split(key, 3)

    # Input: NCHW, as in PyTorch
    x = jax.random.normal(kx, (batch, cin, grid_size, grid_size), dtype=jnp.float32)
    # Conv2d(128, cout, kernel_size=1) parameters, deterministic init
    weight = jax.random.normal(kw, (cout, cin, 1, 1), dtype=jnp.float32) * 0.05
    bias = jax.random.normal(kb, (cout,), dtype=jnp.float32) * 0.05

    out = yolo_head_forward(x, weight, bias)
    jax.block_until_ready(out)

    # Sanity check vs. plain-JAX reference of the same math.
    ref = jnp.einsum("nchw,oc->nhwo", x, weight.reshape(cout, cin)) + bias
    assert out.shape == (batch, grid_size, grid_size, cout)
    assert jnp.allclose(out, ref, atol=1e-4, rtol=1e-4)

    print("KERNEL_OK")
</pallas_src>

<mosaic_0001>
module attributes {stable_mosaic.version = 11 : i64} {
  func.func @_yolo_head_kernel(%arg0: i32, %arg1: i32, %arg2: memref<1x128x256xf32, #tpu.memory_space<vmem>>, %arg3: memref<24x128xf32, #tpu.memory_space<vmem>>, %arg4: memref<24x1xf32, #tpu.memory_space<vmem>>, %arg5: memref<1x24x256xf32, #tpu.memory_space<vmem>>) attributes {dimension_semantics = [#tpu.dimension_semantics<parallel>, #tpu.dimension_semantics<parallel>], iteration_bounds = array<i64: 2, 1>, scalar_prefetch = 0 : i64, scratch_operands = 0 : i64, tpu.core_type = #tpu.core_type<tc>, window_params = [{transform_indices = @transform_0, window_bounds = array<i64: 1, 128, 256>}, {pipeline_mode = #tpu.pipeline_mode<synchronous>, transform_indices = @transform_1, window_bounds = array<i64: 24, 128>}, {pipeline_mode = #tpu.pipeline_mode<synchronous>, transform_indices = @transform_2, window_bounds = array<i64: 24, 1>}, {transform_indices = @transform_3, window_bounds = array<i64: 1, 24, 256>}]} {
    %c0 = arith.constant 0 : index
    %c0_0 = arith.constant 0 : index
    %0 = vector.load %arg3[%c0, %c0_0] : memref<24x128xf32, #tpu.memory_space<vmem>>, vector<24x128xf32>
    %c0_1 = arith.constant 0 : index
    %c0_2 = arith.constant 0 : index
    %c0_3 = arith.constant 0 : index
    %1 = vector.load %arg2[%c0_1, %c0_2, %c0_3] : memref<1x128x256xf32, #tpu.memory_space<vmem>>, vector<1x128x256xf32>
    %2 = vector.shape_cast %1 : vector<1x128x256xf32> to vector<128x256xf32>
    %cst = arith.constant dense<0.000000e+00> : vector<24x256xf32>
    %3 = tpu.matmul %0, %2, %cst {dimension_numbers = #tpu.dot_dimension_numbers<[1], [0], [0], [1], [0, 0, 1, 1], [], []>} : vector<24x128xf32>, vector<128x256xf32>, vector<24x256xf32> -> vector<24x256xf32>
    %c0_4 = arith.constant 0 : index
    %c0_5 = arith.constant 0 : index
    %4 = vector.load %arg4[%c0_4, %c0_5] : memref<24x1xf32, #tpu.memory_space<vmem>>, vector<24x1xf32>
    %5 = vector.broadcast %4 : vector<24x1xf32> to vector<24x256xf32>
    %6 = arith.addf %3, %5 : vector<24x256xf32>
    %c0_6 = arith.constant 0 : index
    %c0_7 = arith.constant 0 : index
    %c0_8 = arith.constant 0 : index
    %7 = vector.load %arg5[%c0_6, %c0_7, %c0_8] : memref<1x24x256xf32, #tpu.memory_space<vmem>>, vector<1x24x256xf32>
    %8 = vector.shape_cast %7 : vector<1x24x256xf32> to vector<24x256xf32>
    %9 = vector.shape_cast %6 : vector<24x256xf32> to vector<1x24x256xf32>
    tpu.vector_store %arg5[%c0_6, %c0_7, %c0_8], %9 {strides = array<i32>} : memref<1x24x256xf32, #tpu.memory_space<vmem>>, vector<1x24x256xf32>,
    return
  }
  func.func @transform_0(%arg0: i32, %arg1: i32) -> (i32, i32, i32) {
    %c0_i32 = arith.constant 0 : i32
    %c0_i32_0 = arith.constant 0 : i32
    return %arg0, %c0_i32, %arg1 : i32, i32, i32
  }
  func.func @transform_1(%arg0: i32, %arg1: i32) -> (i32, i32) {
    %c0_i32 = arith.constant 0 : i32
    %c0_i32_0 = arith.constant 0 : i32
    %c0_i32_1 = arith.constant 0 : i32
    return %c0_i32, %c0_i32_0 : i32, i32
  }
  func.func @transform_2(%arg0: i32, %arg1: i32) -> (i32, i32) {
    %c0_i32 = arith.constant 0 : i32
    %c0_i32_0 = arith.constant 0 : i32
    %c0_i32_1 = arith.constant 0 : i32
    return %c0_i32, %c0_i32_0 : i32, i32
  }
  func.func @transform_3(%arg0: i32, %arg1: i32) -> (i32, i32, i32) {
    %c0_i32 = arith.constant 0 : i32
    %c0_i32_0 = arith.constant 0 : i32
    return %arg0, %c0_i32, %arg1 : i32, i32, i32
  }
}

</mosaic_0001>

<llo_original>
// kernel: yolo_head_forward.1
$region0: #{yolo_head_forward.1}
  #allocation0 [shape = 'u32[]', space=smem, size = 0x4, offset = 0x4, fixed_abs, tag = 'smem constant byte address 0x4 - core index']
  #allocation1 [shape = 'u32[72,128]{1,0:T(1,128)}', space=vmem, size = 0x9000, scoped, tag = 'internal scratch']
  %s0 = inlined_call_operand.vmem [shape: f32[2,128,256], index: 0, kind: input, shape index: {}]
  %s1 = inlined_call_operand.vmem [shape: f32[24,128], index: 1, kind: input, shape index: {}]
  %s2 = inlined_call_operand.vmem [shape: f32[24,1], index: 2, kind: input, shape index: {}]
  %s3 = inlined_call_operand.vmem [shape: f32[2,24,256], index: 3, kind: output, shape index: {}]
  %s4 = sld [smem:[#allocation0]]
  $region45: #{yolo_head_forward.1} parent=0
    _
  %s6 = ssub.s32 1, %s4
  %s7 = scalar_select 0, %s6, %s4
  loop: start=0, step=1, limit=4
  $region2: #{yolo_head_forward.1} parent=0 // loop_pre_header
    _
  $region3: #{yolo_head_forward.1} parent=0 // loop_header
    %s9 = sphi 0, %s13
    %p10 = scmp.ge.s32.totalorder %s9, 4
    %s16 = sphi 0, %s28
    %s17 = sphi 0, %s24
    %s18 = sphi 0, %s16
    %s19 = sphi 0, %s17
    %s20 = sphi 0, %s18
    %s21 = sphi 0, %s19
    %s33 = sphi 0, %s35
    %s36 = sphi 0, %s33
    %s37 = sphi 0, %s36
    %s53 = sphi 0, %s37
    %s57 = sphi 0, %s57
    %s59 = sphi 0, %s57
    %s60 = sphi 0, %s59
    %s74 = sphi 0, %s60
    %s78 = sphi 0, %s78
    %s80 = sphi 0, %s78
    %s81 = sphi 0, %s80
    %s95 = sphi 0, %s81
    %s103 = sphi 0, %s105
    %s106 = sphi 0, %s103
    %s107 = sphi 0, %s106
    %s123 = sphi 0, %s107
  $region4: #{yolo_head_forward.1} parent=0 // loop_header_branch
    %12 = sbr.rel (%p10) target = $region8
  $region5: #{yolo_head_forward.1} parent=0 // loop_body
    %s14 = ssub.s32 %s9, 1
    %s15 = ssub.s32 %s9, 2
    %s22 = sadd.s32 1, %s17
    %p23 = scmp.ge.s32.totalorder %s22, 1
    %s24 = scalar_select %p23, 0, %s22
    %s25 = sadd.s32 1, %s16
    %s26 = scalar_select %p23, %s25, %s16
    %p27 = scmp.ge.s32.totalorder %s26, 2
    %s28 = scalar_select %p27, 0, %s26
    %s29 = ssub.s32 %s16, %s28
    %s30 = ssub.s32 %s17, %s24
    %s31 = sor.u32 %s29, %s30
    %p32 = scmp.eq.s32.totalorder %s31, 0
    %s34 = sadd.s32 %s33, 1
    %s35 = scalar_select %p32, %s33, %s34
    %p38 = pneg %p32
    %p39 = scmp.eq.s32.totalorder %s9, 1
    %p40 = por %p38, %p39
    %p41 = scmp.ne.s32.totalorder %s33, %s36
    %p42 = scmp.eq.s32.totalorder %s9, 0
    %p43 = por %p41, %p42
    %p44 = scmp.ne.s32.totalorder %s33, %s36
    %p45 = scmp.eq.s32.totalorder %s14, 1
    %p46 = por %p44, %p45
    %p47 = scmp.ne.s32.totalorder %s36, %s37
    %p48 = scmp.eq.s32.totalorder %s14, 0
    %p49 = por %p47, %p48
    %p50 = scmp.ne.s32.totalorder %s36, %s37
    %p51 = scmp.eq.s32.totalorder %s15, 1
    %p52 = por %p50, %p51
    %p54 = scmp.ne.s32.totalorder %s37, %s53
    %p55 = scmp.eq.s32.totalorder %s15, 0
    %p56 = por %p54, %p55
    %s58 = sadd.s32 %s57, 1
    %p61 = scmp.eq.s32.totalorder %s9, 1
    %p62 = scmp.ne.s32.totalorder %s57, %s59
    %p63 = scmp.eq.s32.totalorder %s9, 0
    %p64 = por %p62, %p63
    %p65 = scmp.ne.s32.totalorder %s57, %s59
    %p66 = scmp.eq.s32.totalorder %s14, 1
    %p67 = por %p65, %p66
    %p68 = scmp.ne.s32.totalorder %s59, %s60
    %p69 = scmp.eq.s32.totalorder %s14, 0
    %p70 = por %p68, %p69
    %p71 = scmp.ne.s32.totalorder %s59, %s60
    %p72 = scmp.eq.s32.totalorder %s15, 1
    %p73 = por %p71, %p72
    %p75 = scmp.ne.s32.totalorder %s60, %s74
    %p76 = scmp.eq.s32.totalorder %s15, 0
    %p77 = por %p75, %p76
    %s79 = sadd.s32 %s78, 1
    %p82 = scmp.eq.s32.totalorder %s9, 1
    %p83 = scmp.ne.s32.totalorder %s78, %s80
    %p84 = scmp.eq.s32.totalorder %s9, 0
    %p85 = por %p83, %p84
    %p86 = scmp.ne.s32.totalorder %s78, %s80
    %p87 = scmp.eq.s32.totalorder %s14, 1
    %p88 = por %p86, %p87
    %p89 = scmp.ne.s32.totalorder %s80, %s81
    %p90 = scmp.eq.s32.totalorder %s14, 0
    %p91 = por %p89, %p90
    %p92 = scmp.ne.s32.totalorder %s80, %s81
    %p93 = scmp.eq.s32.totalorder %s15, 1
    %p94 = por %p92, %p93
    %p96 = scmp.ne.s32.totalorder %s81, %s95
    %p97 = scmp.eq.s32.totalorder %s15, 0
    %p98 = por %p96, %p97
    %s99 = ssub.s32 %s16, %s28
    %s100 = ssub.s32 %s17, %s24
    %s101 = sor.u32 %s99, %s100
    %p102 = scmp.eq.s32.totalorder %s101, 0
    %s104 = sadd.s32 %s103, 1
    %s105 = scalar_select %p102, %s103, %s104
    %p108 = pneg %p102
    %p109 = scmp.eq.s32.totalorder %s9, 1
    %p110 = por %p108, %p109
    %p111 = scmp.ne.s32.totalorder %s103, %s106
    %p112 = scmp.eq.s32.totalorder %s9, 0
    %p113 = por %p111, %p112
    %p114 = scmp.ne.s32.totalorder %s103, %s106
    %p115 = scmp.eq.s32.totalorder %s14, 1
    %p116 = por %p114, %p115
    %p117 = scmp.ne.s32.totalorder %s106, %s107
    %p118 = scmp.eq.s32.totalorder %s14, 0
    %p119 = por %p117, %p118
    %p120 = scmp.ne.s32.totalorder %s106, %s107
    %p121 = scmp.eq.s32.totalorder %s15, 1
    %p122 = por %p120, %p121
    %p124 = scmp.ne.s32.totalorder %s107, %s123
    %p125 = scmp.eq.s32.totalorder %s15, 0
    %p126 = por %p124, %p125
    %p127 = scmp.le.s32.totalorder 1, %s9
    %p128 = scmp.lt.s32.totalorder %s9, 3
    %p129 = pnand %p127, %p128
    %p130 = pneg %p129
    // Predicated region
    $region9: #{yolo_head_forward.1} parent=5 // pred_check
      _
    $region10: #{yolo_head_forward.1} parent=5 // pred_check_branch
      %132 = sbr.rel (%p129) target = $region12
    $region11: #{yolo_head_forward.1} parent=5 // pred_region
      %s133 = ssub.s32 %s9, 1
      // Predicated region
      $region13: #{yolo_head_forward.1} parent=11 // pred_check
        %p134 = pneg %p70
      $region14: #{yolo_head_forward.1} parent=11 // pred_check_branch
        %136 = sbr.rel (%p134) target = $region16
      $region15: #{yolo_head_forward.1} parent=11 // pred_region
        _
      $region16: #{yolo_head_forward.1} parent=11 // pred_fallthru
        _
      // Predicated region
      $region17: #{yolo_head_forward.1} parent=11 // pred_check
        %p137 = pneg %p91
      $region18: #{yolo_head_forward.1} parent=11 // pred_check_branch
        %139 = sbr.rel (%p137) target = $region20
      $region19: #{yolo_head_forward.1} parent=11 // pred_region
        _
      $region20: #{yolo_head_forward.1} parent=11 // pred_fallthru
        _
    $region12: #{yolo_head_forward.1} parent=5 // pred_fallthru
      _
    %p140 = scmp.lt.s32.totalorder %s9, 2
    // Predicated region
    $region21: #{yolo_head_forward.1} parent=5 // pred_check
      %p141 = pneg %p140
    $region22: #{yolo_head_forward.1} parent=5 // pred_check_branch
      %143 = sbr.rel (%p141) target = $region24
    $region23: #{yolo_head_forward.1} parent=5 // pred_region
      // Predicated region
      $region25: #{yolo_head_forward.1} parent=23 // pred_check
        %p144 = pneg %p43
      $region26: #{yolo_head_forward.1} parent=23 // pred_check_branch
        %146 = sbr.rel (%p144) target = $region28
      $region27: #{yolo_head_forward.1} parent=23 // pred_region
        %s147 = smul.u32 2, %s17
        %p148 = scmp.lt.s32.totalorder %s16, 1
        %s149 = scalar_select %p148, %s16, 1
        %p150 = scmp.lt.s32.totalorder %s147, 1
        %s151 = scalar_select %p150, %s147, 1
        %s152 = smul.addr %s149, 32
        %s153 = sadd.s32 %s151, %s152
        %s154 = smul.addr %s153, 8
        %s155 = scalar_lea.vmem %s0, %s154
        %s156 = smul.u32 2, %s17
      $region28: #{yolo_head_forward.1} parent=23 // pred_fallthru
        _
    $region24: #{yolo_head_forward.1} parent=5 // pred_fallthru
      _
    %p157 = scmp.le.s32.totalorder 1, %s9
    %p158 = scmp.lt.s32.totalorder %s9, 3
    %p159 = pnand %p157, %p158
    %p160 = pneg %p159
    // Predicated region
    $region29: #{yolo_head_forward.1} parent=5 // pred_check
      _
    $region30: #{yolo_head_forward.1} parent=5 // pred_check_branch
      %162 = sbr.rel (%p159) target = $region32
    $region31: #{yolo_head_forward.1} parent=5 // pred_region
      %s163 = ssub.s32 %s9, 1
      %s164 = smul.u32 2, %s19
      %p165 = scmp.lt.s32.totalorder %s18, 1
      %s166 = scalar_select %p165, %s18, 1
      %p167 = scmp.lt.s32.totalorder %s164, 1
      %s168 = scalar_select %p167, %s164, 1
      %s169 = smul.addr %s166, 32
      %s170 = sadd.s32 %s168, %s169
      %s171 = smul.addr %s170, 8
      %s172 = scalar_lea.vmem %s0, %s171
      %p173 = pneg %p49
      %p174 = pneg %p46
      %p175 = pneg %p70
      %p176 = pneg %p67
      %p177 = pneg %p91
      %p178 = pneg %p88
      %p179 = pneg %p119
      %p180 = pneg %p116
      %s181 = smul.u32 2, %s19
      %p182 = scmp.lt.s32.totalorder %s18, 1
      %s183 = scalar_select %p182, %s18, 1
      %p184 = scmp.lt.s32.totalorder %s181, 1
      %s185 = scalar_select %p184, %s181, 1
      %s186 = smul.addr %s183, 6
      %s187 = sadd.s32 %s185, %s186
      %s188 = smul.addr %s187, 8
      %s189 = scalar_lea.vmem %s3, %s188
      %s190 = smul.u32 2, %s19
      %p191 = scmp.lt.s32.totalorder %s18, 1
      %s192 = scalar_select %p191, %s18, 1
      %p193 = scmp.lt.s32.totalorder %s190, 1
      %s194 = scalar_select %p193, %s190, 1
      %s195 = smul.addr %s192, 32
      %s196 = sadd.s32 %s194, %s195
      %s197 = smul.addr %s196, 8
      %s198 = scalar_lea.vmem %s0, %s197
      %s199 = smul.u32 2, %s19
      %s200 = smul.u32 2, %s19
      %p201 = scmp.lt.s32.totalorder %s18, 1
      %s202 = scalar_select %p201, %s18, 1
      %p203 = scmp.lt.s32.totalorder %s200, 1
      %s204 = scalar_select %p203, %s200, 1
      %s205 = smul.addr %s202, 6
      %s206 = sadd.s32 %s204, %s205
      %s207 = smul.addr %s206, 8
      %s208 = scalar_lea.vmem %s3, %s207
      %s209 = smul.u32 2, %s19
      %v210 = vld [vmem:[%s1] sm:$0xff]
      %v211 = vld [vmem:[%s1 + $0x8] sm:$0xff]
      %v212 = vld [vmem:[%s1 + $0x10] sm:$0xff]
      %v213 = vld [vmem:[%s198] sm:$0xff]
      %v214 = vld [vmem:[%s198 + $0x8] sm:$0xff]
      %v215 = vld [vmem:[%s198 + $0x10] sm:$0xff]
      %v216 = vld [vmem:[%s198 + $0x18] sm:$0xff]
      %v217 = vld [vmem:[%s198 + $0x20] sm:$0xff]
      %v218 = vld [vmem:[%s198 + $0x28] sm:$0xff]
      %v219 = vld [vmem:[%s198 + $0x30] sm:$0xff]
      %v220 = vld [vmem:[%s198 + $0x38] sm:$0xff]
      %v221 = vld [vmem:[%s198 + $0x40] sm:$0xff]
      %v222 = vld [vmem:[%s198 + $0x48] sm:$0xff]
      %v223 = vld [vmem:[%s198 + $0x50] sm:$0xff]
      %v224 = vld [vmem:[%s198 + $0x58] sm:$0xff]
      %v225 = vld [vmem:[%s198 + $0x60] sm:$0xff]
      %v226 = vld [vmem:[%s198 + $0x68] sm:$0xff]
      %v227 = vld [vmem:[%s198 + $0x70] sm:$0xff]
      %v228 = vld [vmem:[%s198 + $0x78] sm:$0xff]
      %v229 = vld [vmem:[%s198 + $0x80] sm:$0xff]
      %v230 = vld [vmem:[%s198 + $0x88] sm:$0xff]
      %v231 = vld [vmem:[%s198 + $0x90] sm:$0xff]
      %v232 = vld [vmem:[%s198 + $0x98] sm:$0xff]
      %v233 = vld [vmem:[%s198 + $0xa0] sm:$0xff]
      %v234 = vld [vmem:[%s198 + $0xa8] sm:$0xff]
      %v235 = vld [vmem:[%s198 + $0xb0] sm:$0xff]
      %v236 = vld [vmem:[%s198 + $0xb8] sm:$0xff]
      %v237 = vld [vmem:[%s198 + $0xc0] sm:$0xff]
      %v238 = vld [vmem:[%s198 + $0xc8] sm:$0xff]
      %v239 = vld [vmem:[%s198 + $0xd0] sm:$0xff]
      %v240 = vld [vmem:[%s198 + $0xd8] sm:$0xff]
      %v241 = vld [vmem:[%s198 + $0xe0] sm:$0xff]
      %v242 = vld [vmem:[%s198 + $0xe8] sm:$0xff]
      %v243 = vld [vmem:[%s198 + $0xf0] sm:$0xff]
      %v244 = vld [vmem:[%s198 + $0xf8] sm:$0xff]
      %v245 = vld [vmem:[%s2] sm:$0xff]
      %v246 = vld [vmem:[%s2 + $0x8] sm:$0xff]
      %v247 = vld [vmem:[%s2 + $0x10] sm:$0xff]
      %249 = vset.pattern.permute.xlu0 0
      %250 = vperm.xlu0 %249, %v245
      %v251 = vpop.permute.xlu0 %250
      %254 = vset.pattern.permute.xlu0 0
      %255 = vperm.xlu0 %254, %v246
      %v256 = vpop.permute.xlu0 %255
      %259 = vset.pattern.permute.xlu0 0
      %260 = vperm.xlu0 %259, %v247
      %v261 = vpop.permute.xlu0 %260
      %263 = vmatpush.msra.mxu0 %v243
      %264 = vmatpush.msra.mxu0 %v241
      %265 = vmatpush.msra.mxu0 %v239
      %266 = vmatpush.msra.mxu0 %v237
      %267 = vmatpush.msra.mxu0 %v235
      %268 = vmatpush.msra.mxu0 %v233
      %269 = vmatpush.msra.mxu0 %v231
      %270 = vmatpush.msra.mxu0 %v229
      %271 = vmatpush.msra.mxu0 %v227
      %272 = vmatpush.msra.mxu0 %v225
      %273 = vmatpush.msra.mxu0 %v223
      %274 = vmatpush.msra.mxu0 %v221
      %275 = vmatpush.msra.mxu0 %v219
      %276 = vmatpush.msra.mxu0 %v217
      %277 = vmatpush.msra.mxu0 %v215
      %278 = vmatpush.msra.mxu0 %v213
      %279 = vmatmul.f32.gmra.mxu0 %v210
      %v280 = vpop.f32.mrf.mxu0
      %v281 = vadd.f32 %v251, %v280
      %282 = vmatmul.f32.gmra.mxu0 %v211
      %v283 = vpop.f32.mrf.mxu0
      %v284 = vadd.f32 %v256, %v283
      %285 = vmatmul.f32.gmra.mxu0 %v212
      %v286 = vpop.f32.mrf.mxu0
      %v287 = vadd.f32 %v261, %v286
      %288 = vdwg.mxu0
      %289 = vmatpush.msra.mxu0 %v244
      %290 = vmatpush.msra.mxu0 %v242
      %291 = vmatpush.msra.mxu0 %v240
      %292 = vmatpush.msra.mxu0 %v238
      %293 = vmatpush.msra.mxu0 %v236
      %294 = vmatpush.msra.mxu0 %v234
      %295 = vmatpush.msra.mxu0 %v232
      %296 = vmatpush.msra.mxu0 %v230
      %297 = vmatpush.msra.mxu0 %v228
      %298 = vmatpush.msra.mxu0 %v226
      %299 = vmatpush.msra.mxu0 %v224
      %300 = vmatpush.msra.mxu0 %v222
      %301 = vmatpush.msra.mxu0 %v220
      %302 = vmatpush.msra.mxu0 %v218
      %303 = vmatpush.msra.mxu0 %v216
      %304 = vmatpush.msra.mxu0 %v214
      %305 = vmatmul.f32.gmra.mxu0 %v210
      %v306 = vpop.f32.mrf.mxu0
      %v307 = vadd.f32 %v251, %v306
      %308 = vmatmul.f32.gmra.mxu0 %v211
      %v309 = vpop.f32.mrf.mxu0
      %v310 = vadd.f32 %v256, %v309
      %311 = vmatmul.f32.gmra.mxu0 %v212
      %v312 = vpop.f32.mrf.mxu0
      %v313 = vadd.f32 %v261, %v312
      %314 = vdwg.mxu0
      %315 = vst [vmem:[%s208] sm:$0xff] %v281
      %316 = vst [vmem:[%s208 + $0x8] sm:$0xff] %v307
      %317 = vst [vmem:[%s208 + $0x10] sm:$0xff] %v284
      %318 = vst [vmem:[%s208 + $0x18] sm:$0xff] %v310
      %319 = vst [vmem:[%s208 + $0x20] sm:$0xff] %v287
      %320 = vst [vmem:[%s208 + $0x28] sm:$0xff] %v313
      %s321 = smul.u32 2, %s19
      %p322 = scmp.lt.s32.totalorder %s18, 1
      %s323 = scalar_select %p322, %s18, 1
      %p324 = scmp.lt.s32.totalorder %s321, 1
      %s325 = scalar_select %p324, %s321, 1
      %s326 = smul.addr %s323, 6
      %s327 = sadd.s32 %s325, %s326
      %s328 = smul.addr %s327, 8
      %s329 = scalar_lea.vmem %s3, %s328
      // Predicated region
      $region33: #{yolo_head_forward.1} parent=31 // pred_check
        %p330 = pneg %p116
      $region34: #{yolo_head_forward.1} parent=31 // pred_check_branch
        %332 = sbr.rel (%p330) target = $region36
      $region35: #{yolo_head_forward.1} parent=31 // pred_region
        %s333 = smul.u32 2, %s19
      $region36: #{yolo_head_forward.1} parent=31 // pred_fallthru
        _
    $region32: #{yolo_head_forward.1} parent=5 // pred_fallthru
      _
    %p334 = scmp.le.s32.totalorder 2, %s9
    // Predicated region
    $region37: #{yolo_head_forward.1} parent=5 // pred_check
      %p335 = pneg %p334
    $region38: #{yolo_head_forward.1} parent=5 // pred_check_branch
      %337 = sbr.rel (%p335) target = $region40
    $region39: #{yolo_head_forward.1} parent=5 // pred_region
      %s338 = ssub.s32 %s9, 2
      // Predicated region
      $region41: #{yolo_head_forward.1} parent=39 // pred_check
        %p339 = pneg %p122
      $region42: #{yolo_head_forward.1} parent=39 // pred_check_branch
        %341 = sbr.rel (%p339) target = $region44
      $region43: #{yolo_head_forward.1} parent=39 // pred_region
        %s342 = smul.u32 2, %s21
        %p343 = scmp.lt.s32.totalorder %s20, 1
        %s344 = scalar_select %p343, %s20, 1
        %p345 = scmp.lt.s32.totalorder %s342, 1
        %s346 = scalar_select %p345, %s342, 1
        %s347 = smul.addr %s344, 6
        %s348 = sadd.s32 %s346, %s347
        %s349 = smul.addr %s348, 8
        %s350 = scalar_lea.vmem %s3, %s349
      $region44: #{yolo_head_forward.1} parent=39 // pred_fallthru
        _
    $region40: #{yolo_head_forward.1} parent=5 // pred_fallthru
      _
  $region6: #{yolo_head_forward.1} parent=0 // loop_footer
    %s13 = sadd.s32 1, %s9
  $region7: #{yolo_head_forward.1} parent=0 // loop_footer_branch
    %8 = sbr.rel target = $region3
  $region8: #{yolo_head_forward.1} parent=0 // loop_exit
    _

</llo_original>
